<compile_context>
chip_gen: v6e
topology: v6e:2x2x1
jax: 0.10.0
libtpu: 0.0.40
codegen_flags: <defaults>
</compile_context>

<pallas_src>
import functools
import math

import jax
import jax.numpy as jnp
from jax.experimental import pallas as pl
from jax.experimental.pallas import tpu as pltpu


NEG_FILL = -100000.0


# --------------------------------------------------------------------------- kernels
def _softmax_lastdim_f32(x):
    """Numerically-stable softmax along the lane (last) axis, f32 throughout."""
    m = jnp.max(x, axis=-1, keepdims=True)
    e = jnp.exp(x - m)
    s = jnp.sum(e, axis=-1, keepdims=True)
    inv = pl.reciprocal(s, approx=True)      # EUP vrcp slot (otherwise idle)
    inv = inv * (2.0 - s * inv)              # one Newton step on the tiny (rows,1) column
    return e * inv


def _xsoftmax_bias_kernel(x_ref, bias_ref, o_ref):
    # bias_ref is a tiny (1, K) f32 additive bias (0 where keep, -100000 where masked),
    # reused for every row chunk of the batch.  x_ref / o_ref are (rows, K).
    x = x_ref[...].astype(jnp.float32) + bias_ref[...]
    o_ref[...] = _softmax_lastdim_f32(x).astype(o_ref.dtype)


def _xsoftmax_mask_kernel(x_ref, mask_ref, o_ref):
    # mask_ref is an int8 (rows, K) keep-mask (nonzero = keep).
    bias = jnp.where(mask_ref[...] == 0, jnp.float32(NEG_FILL), jnp.float32(0.0))
    x = x_ref[...].astype(jnp.float32) + bias
    o_ref[...] = _softmax_lastdim_f32(x).astype(o_ref.dtype)


# --------------------------------------------------------------------------- tiling helpers
@functools.lru_cache(maxsize=None)
def _vmem_budget_bytes():
    """(input-tile target bytes, vmem_limit_bytes), aware of the TPU generation."""
    try:
        cap = int(pltpu.get_tpu_info().vmem_capacity_bytes)
    except Exception:
        cap = 64 * 1024 * 1024
    if cap >= 100 * 1024 * 1024:                  # v5e / v6e: 128 MiB VMEM per core
        return 4 * 1024 * 1024, 96 * 1024 * 1024
    return 2 * 1024 * 1024, 56 * 1024 * 1024      # v7x: 64 MiB VMEM per core


def _divisors(n):
    ds = set()
    i = 1
    while i * i <= n:
        if n % i == 0:
            ds.add(i)
            ds.add(n // i)
        i += 1
    return sorted(ds)


def _pick_block_rows(divisor_base, total_rows, batch, K, itemsize, target_bytes):
    """Largest multiple-of-8 divisor of `divisor_base` whose input tile fits the
    byte target; prefers a choice that gives the (parallel) grid >= 2 blocks so
    both v7x TensorCores get work.  Returns None if no multiple-of-8 divisor exists."""
    cands = [d for d in _divisors(divisor_base) if d % 8 == 0]
    if not cands:
        return None
    max_rows = max(8, target_bytes // max(1, K * itemsize))
    fitting = [d for d in cands if d <= max_rows]
    best = max(fitting) if fitting else min(cands)
    if batch * (total_rows // best) < 2:
        two_plus = [d for d in cands if total_rows // d >= 2]
        if two_plus:
            fit2 = [d for d in two_plus if d <= max_rows]
            best = max(fit2) if fit2 else min(two_plus)
    return best


# --------------------------------------------------------------------------- wrapper
@functools.partial(jax.jit, static_argnames=("block_rows",))
def _xsoftmax_lastdim(inp, mask, block_rows=None):
    orig_shape = inp.shape
    nd = inp.ndim
    assert nd >= 2, "xsoftmax expects at least a 2-D input [..., K]"
    K = int(orig_shape[-1])
    if nd >= 3:
        B = int(orig_shape[0])
        R = math.prod(int(d) for d in orig_shape[1:-1])
        Q = int(orig_shape[-2])
    else:
        B, R, Q = 1, int(orig_shape[0]), int(orig_shape[0])
    x3 = inp.reshape(B, R, K)

    if mask.ndim < nd:
        mask = mask.reshape((1,) * (nd - mask.ndim) + mask.shape)

    target_bytes, vmem_limit = _vmem_budget_bytes()
    itemsize = jnp.dtype(inp.dtype).itemsize
    mb = int(mask.shape[0])

    # ---- classify the mask (static shapes -> resolved at trace time)
    bias_ok = all(int(d) == 1 for d in mask.shape[1:-1]) and mb in (1, B)
    qmask_ok = (nd >= 3 and int(mask.shape[-2]) == Q and mb in (1, B)
                and all(int(d) == 1 for d in mask.shape[1:-2]))
    path = "bias" if bias_ok else ("qmask" if qmask_ok else "full")

    # ---- pick block_rows: always a divisor of R (no pad / slice HBM passes)
    if block_rows is not None:
        br = int(block_rows)
        assert R % br == 0 and (br % 8 == 0 or br == R), \
            "block_rows must divide the row count and be a multiple of 8 (or full extent)"
        if path == "qmask" and Q % br != 0:
            path = "full"
    else:
        if path == "qmask":
            br = _pick_block_rows(Q, R, B, K, itemsize, target_bytes)
            if br is None:
                path = "full"
                br = _pick_block_rows(R, R, B, K, itemsize, target_bytes)
        else:
            br = _pick_block_rows(R, R, B, K, itemsize, target_bytes)
        if br is None:
            # TODO(synk): no multiple-of-8 divisor; full-extent block is always legal
            # but can be large for huge prime-ish R (rare for attention shapes).
            br = R
    num_r = R // br

    x_spec = pl.BlockSpec((pl.Squeezed(), br, K), lambda b, r: (b, r, 0))
    o_spec = pl.BlockSpec((pl.Squeezed(), br, K), lambda b, r: (b, r, 0))

    if path == "bias":
        keep = (mask != 0).reshape(mb, 1, int(mask.shape[-1]))
        aux = jnp.where(jnp.broadcast_to(keep, (B, 1, K)), 0.0, NEG_FILL).astype(jnp.float32)
        aux_spec = pl.BlockSpec((pl.Squeezed(), 1, K), lambda b, r: (b, 0, 0))
        kernel = _xsoftmax_bias_kernel
    elif path == "qmask":
        keep = (mask != 0).reshape(mb, Q, int(mask.shape[-1]))
        aux = jnp.broadcast_to(keep, (B, Q, K)).astype(jnp.int8)
        num_rq = Q // br
        aux_spec = pl.BlockSpec((pl.Squeezed(), br, K),
                                lambda b, r: (b, r % num_rq, 0))
        kernel = _xsoftmax_mask_kernel
    else:
        aux = jnp.broadcast_to(mask != 0, orig_shape).astype(jnp.int8).reshape(B, R, K)
        aux_spec = pl.BlockSpec((pl.Squeezed(), br, K), lambda b, r: (b, r, 0))
        kernel = _xsoftmax_mask_kernel

    out3 = pl.pallas_call(
        kernel,
        out_shape=jax.ShapeDtypeStruct((B, R, K), inp.dtype),
        grid_spec=pltpu.PrefetchScalarGridSpec(
            num_scalar_prefetch=0,
            grid=(B, num_r),                 # B outer, rows inner: mask tile stays resident
            in_specs=[x_spec, aux_spec],
            out_specs=o_spec,
        ),
        compiler_params=pltpu.CompilerParams(
            dimension_semantics=("parallel", "parallel"),
            vmem_limit_bytes=vmem_limit,
        ),
    )(x3, aux)
    return out3.reshape(orig_shape)


def xsoftmax(inp, mask, *, dim=-1, block_rows=None):
    """XSoftmax forward.  inp: float [..., K]; mask: broadcastable, nonzero = keep."""
    inp = jnp.asarray(inp)
    mask = jnp.asarray(mask)
    nd = inp.ndim
    if mask.ndim < nd:
        mask = mask.reshape((1,) * (nd - mask.ndim) + mask.shape)
    d = dim % nd
    if d != nd - 1:
        # TODO(synk): non-last-dim softmax pays a wrapper-side transpose pass each way
        # (DeBERTa always uses dim=-1, so this path is uncommon).
        out = _xsoftmax_lastdim(jnp.moveaxis(inp, d, -1), jnp.moveaxis(mask, d, -1),
                                block_rows=block_rows)
        return jnp.moveaxis(out, -1, d)
    return _xsoftmax_lastdim(inp, mask, block_rows=block_rows)


def _reference(inp, mask, dim=-1):
    """Pure-JAX reference mirroring the PyTorch module exactly."""
    rmask = (jnp.broadcast_to(mask, inp.shape) == 0).astype(jnp.int32)
    x = inp.astype(jnp.float32) + (-100000.0) * rmask
    y = jax.nn.softmax(x, axis=dim)
    return y + 0 * rmask


if __name__ == "__main__":
    # Small DeBERTa-like attention-score shapes: [batch, heads, q_len, k_len]
    B, H, Q, K = 2, 4, 8, 128
    key = jax.random.PRNGKey(0)
    k1, k2, k3, k4 = jax.random.split(key, 4)

    inp = jax.random.normal(k1, (B, H, Q, K), dtype=jnp.float32)
    # attention mask [B, 1, 1, K]: 1 = attend, 0 = masked  (fast bias path)
    mask = (jax.random.uniform(k2, (B, 1, 1, K)) > 0.3).astype(jnp.int32)

    out = jax.block_until_ready(xsoftmax(inp, mask))
    ref = _reference(inp, mask)
    assert out.shape == inp.shape and out.dtype == inp.dtype
    assert jnp.allclose(out, ref, atol=1e-4, rtol=1e-4), "f32 mismatch vs reference"

    # bf16 I/O path (HBM traffic halved; compute still f32 in-kernel)
    out_bf16 = jax.block_until_ready(xsoftmax(inp.astype(jnp.bfloat16), mask))
    assert out_bf16.dtype == jnp.bfloat16
    assert jnp.allclose(out_bf16.astype(jnp.float32), ref, atol=2e-2, rtol=2e-2), \
        "bf16 mismatch vs reference"

    # per-query-row mask [B, 1, Q, K]: head-broadcast without materializing over H
    mask_q = (jax.random.uniform(k3, (B, 1, Q, K)) > 0.3).astype(jnp.int32)
    out_q = jax.block_until_ready(xsoftmax(inp, mask_q))
    assert jnp.allclose(out_q, _reference(inp, mask_q), atol=1e-4, rtol=1e-4), \
        "q-mask mismatch vs reference"

    # full-shape mask exercising the general fallback path
    mask_full = (jax.random.uniform(k4, (B, H, Q, K)) > 0.3).astype(jnp.int32)
    out_full = jax.block_until_ready(xsoftmax(inp, mask_full))
    assert jnp.allclose(out_full, _reference(inp, mask_full), atol=1e-4, rtol=1e-4), \
        "full-mask mismatch vs reference"

    # row count with no multiple-of-8 divisor -> full-extent block fallback
    inp_odd = jax.random.normal(k1, (1, 1, 6, K), dtype=jnp.float32)
    mask_odd = (jax.random.uniform(k2, (1, 1, 1, K)) > 0.3).astype(jnp.int32)
    out_odd = jax.block_until_ready(xsoftmax(inp_odd, mask_odd))
    assert jnp.allclose(out_odd, _reference(inp_odd, mask_odd), atol=1e-4, rtol=1e-4), \
        "odd-rows mismatch vs reference"

    print("KERNEL_OK")
</pallas_src>

<mosaic_0001>
module attributes {stable_mosaic.version = 11 : i64} {
  func.func @_xsoftmax_bias_kernel(%arg0: i32, %arg1: i32, %arg2: memref<1x32x128xf32, #tpu.memory_space<vmem>>, %arg3: memref<1x1x128xf32, #tpu.memory_space<vmem>>, %arg4: memref<1x32x128xf32, #tpu.memory_space<vmem>>) attributes {dimension_semantics = [#tpu.dimension_semantics<parallel>, #tpu.dimension_semantics<parallel>], iteration_bounds = array<i64: 2, 1>, scalar_prefetch = 0 : i64, scratch_operands = 0 : i64, tpu.core_type = #tpu.core_type<tc>, window_params = [{transform_indices = @transform_0, window_bounds = array<i64: 1, 32, 128>}, {transform_indices = @transform_1, window_bounds = array<i64: 1, 1, 128>}, {transform_indices = @transform_2, window_bounds = array<i64: 1, 32, 128>}]} {
    %c0 = arith.constant 0 : index
    %c0_0 = arith.constant 0 : index
    %c0_1 = arith.constant 0 : index
    %0 = vector.load %arg2[%c0, %c0_0, %c0_1] : memref<1x32x128xf32, #tpu.memory_space<vmem>>, vector<1x32x128xf32>
    %1 = vector.shape_cast %0 : vector<1x32x128xf32> to vector<32x128xf32>
    %c0_2 = arith.constant 0 : index
    %c0_3 = arith.constant 0 : index
    %c0_4 = arith.constant 0 : index
    %2 = vector.load %arg3[%c0_2, %c0_3, %c0_4] : memref<1x1x128xf32, #tpu.memory_space<vmem>>, vector<1x1x128xf32>
    %3 = vector.shape_cast %2 : vector<1x1x128xf32> to vector<1x128xf32>
    %4 = vector.broadcast %3 : vector<1x128xf32> to vector<32x128xf32>
    %5 = arith.addf %1, %4 : vector<32x128xf32>
    %cst = arith.constant dense<0xFF800000> : vector<32xf32>
    %6 = vector.multi_reduction <maximumf>, %5, %cst [1] : vector<32x128xf32> to vector<32xf32>
    %7 = vector.shape_cast %6 : vector<32xf32> to vector<32x1xf32>
    %8 = vector.broadcast %7 : vector<32x1xf32> to vector<32x128xf32>
    %9 = arith.subf %5, %8 : vector<32x128xf32>
    %10 = math.exp %9 : vector<32x128xf32>
    %cst_5 = arith.constant dense<0.000000e+00> : vector<32xf32>
    %11 = vector.multi_reduction <add>, %10, %cst_5 [1] : vector<32x128xf32> to vector<32xf32>
    %12 = vector.shape_cast %11 : vector<32xf32> to vector<32x1xf32>
    %13 = tpu.reciprocal %12 {approx = true} : vector<32x1xf32> -> vector<32x1xf32>
    %14 = arith.mulf %12, %13 : vector<32x1xf32>
    %cst_6 = arith.constant 2.000000e+00 : f32
    %15 = vector.broadcast %cst_6 : f32 to vector<32x1xf32>
    %16 = arith.subf %15, %14 : vector<32x1xf32>
    %17 = arith.mulf %13, %16 : vector<32x1xf32>
    %18 = vector.broadcast %17 : vector<32x1xf32> to vector<32x128xf32>
    %19 = arith.mulf %10, %18 : vector<32x128xf32>
    %c0_7 = arith.constant 0 : index
    %c0_8 = arith.constant 0 : index
    %c0_9 = arith.constant 0 : index
    %20 = vector.load %arg4[%c0_7, %c0_8, %c0_9] : memref<1x32x128xf32, #tpu.memory_space<vmem>>, vector<1x32x128xf32>
    %21 = vector.shape_cast %20 : vector<1x32x128xf32> to vector<32x128xf32>
    %22 = vector.shape_cast %19 : vector<32x128xf32> to vector<1x32x128xf32>
    tpu.vector_store %arg4[%c0_7, %c0_8, %c0_9], %22 {strides = array<i32>} : memref<1x32x128xf32, #tpu.memory_space<vmem>>, vector<1x32x128xf32>,
    return
  }
  func.func @transform_0(%arg0: i32, %arg1: i32) -> (i32, i32, i32) {
    %c0_i32 = arith.constant 0 : i32
    %c0_i32_0 = arith.constant 0 : i32
    return %arg0, %arg1, %c0_i32 : i32, i32, i32
  }
  func.func @transform_1(%arg0: i32, %arg1: i32) -> (i32, i32, i32) {
    %c0_i32 = arith.constant 0 : i32
    %c0_i32_0 = arith.constant 0 : i32
    %c0_i32_1 = arith.constant 0 : i32
    return %arg0, %c0_i32, %c0_i32_0 : i32, i32, i32
  }
  func.func @transform_2(%arg0: i32, %arg1: i32) -> (i32, i32, i32) {
    %c0_i32 = arith.constant 0 : i32
    %c0_i32_0 = arith.constant 0 : i32
    return %arg0, %arg1, %c0_i32 : i32, i32, i32
  }
}

</mosaic_0001>

<llo_original>
// kernel: _xsoftmax_lastdim.1
$region0: #{_xsoftmax_lastdim.1}
  #allocation0 [shape = 'u32[]', space=smem, size = 0x4, offset = 0x4, fixed_abs, tag = 'smem constant byte address 0x4 - core index']
  #allocation1 [shape = 'u32[144,128]{1,0:T(1,128)}', space=vmem, size = 0x12000, scoped, tag = 'internal scratch']
  %s0 = inlined_call_operand.hbm [shape: f32[2,32,128], index: 0, kind: input, shape index: {}]
  %s1 = inlined_call_operand.vmem [shape: f32[2,1,128], index: 1, kind: input, shape index: {}]
  %s2 = inlined_call_operand.hbm [shape: f32[2,32,128], index: 2, kind: output, shape index: {}]
  %s3 = sld [smem:[#allocation0]]
  $region45: #{_xsoftmax_lastdim.1} parent=0
    _
  %s5 = ssub.s32 1, %s3
  %s6 = scalar_select 0, %s5, %s3
  $region1: #{_xsoftmax_lastdim.1} parent=0
    #allocation2 [shape = 'u8[32768]{0}', space=vmem, size = 0x8000, scoped, tag = 'input window, operand 0']
    #allocation3 [shape = 's32[2]{0}', space=sflag, size = 0x8, scoped, tag = 'scoped memory for _xsoftmax_lastdim.1']
    #allocation4 [shape = 's32[2]{0}', space=sflag, size = 0x8, scoped, tag = 'scoped memory for _xsoftmax_lastdim.1']
    #allocation5 [shape = 'u8[32768]{0}', space=vmem, size = 0x8000, scoped, tag = 'output window, operand 0']
    %7 = vsyncpa [#allocation3], 0
    %s8 = scalar_lea.sflag [#allocation3], 1
    %9 = vsyncpa %s8, 0
    %10 = vsyncpa [#allocation4], 0
    %s11 = scalar_lea.sflag [#allocation4], 1
    %12 = vsyncpa %s11, 0
    loop: start=0, step=1, limit=4
    $region2: #{_xsoftmax_lastdim.1} parent=1 // loop_pre_header
      _
    $region3: #{_xsoftmax_lastdim.1} parent=1 // loop_header
      %s14 = sphi 0, %s18
      %p15 = scmp.ge.s32.totalorder %s14, 4
      %s21 = sphi 0, %s33
      %s22 = sphi 0, %s29
      %s23 = sphi 0, %s21
      %s24 = sphi 0, %s22
      %s25 = sphi 0, %s23
      %s26 = sphi 0, %s24
      %s38 = sphi 0, %s40
      %s41 = sphi 0, %s38
      %s42 = sphi 0, %s41
      %s58 = sphi 0, %s42
      %s64 = sphi 0, %s66
      %s67 = sphi 0, %s64
      %s68 = sphi 0, %s67
      %s84 = sphi 0, %s68
      %s92 = sphi 0, %s94
      %s95 = sphi 0, %s92
      %s96 = sphi 0, %s95
      %s112 = sphi 0, %s96
    $region4: #{_xsoftmax_lastdim.1} parent=1 // loop_header_branch
      %17 = sbr.rel (%p15) target = $region8
    $region5: #{_xsoftmax_lastdim.1} parent=1 // loop_body
      %s19 = ssub.s32 %s14, 1
      %s20 = ssub.s32 %s14, 2
      %s27 = sadd.s32 1, %s22
      %p28 = scmp.ge.s32.totalorder %s27, 1
      %s29 = scalar_select %p28, 0, %s27
      %s30 = sadd.s32 1, %s21
      %s31 = scalar_select %p28, %s30, %s21
      %p32 = scmp.ge.s32.totalorder %s31, 2
      %s33 = scalar_select %p32, 0, %s31
      %s34 = ssub.s32 %s21, %s33
      %s35 = ssub.s32 %s22, %s29
      %s36 = sor.u32 %s34, %s35
      %p37 = scmp.eq.s32.totalorder %s36, 0
      %s39 = sadd.s32 %s38, 1
      %s40 = scalar_select %p37, %s38, %s39
      %p43 = pneg %p37
      %p44 = scmp.eq.s32.totalorder %s14, 1
      %p45 = por %p43, %p44
      %p46 = scmp.ne.s32.totalorder %s38, %s41
      %p47 = scmp.eq.s32.totalorder %s14, 0
      %p48 = por %p46, %p47
      %p49 = scmp.ne.s32.totalorder %s38, %s41
      %p50 = scmp.eq.s32.totalorder %s19, 1
      %p51 = por %p49, %p50
      %p52 = scmp.ne.s32.totalorder %s41, %s42
      %p53 = scmp.eq.s32.totalorder %s19, 0
      %p54 = por %p52, %p53
      %p55 = scmp.ne.s32.totalorder %s41, %s42
      %p56 = scmp.eq.s32.totalorder %s20, 1
      %p57 = por %p55, %p56
      %p59 = scmp.ne.s32.totalorder %s42, %s58
      %p60 = scmp.eq.s32.totalorder %s20, 0
      %p61 = por %p59, %p60
      %s62 = ssub.s32 %s21, %s33
      %p63 = scmp.eq.s32.totalorder %s62, 0
      %s65 = sadd.s32 %s64, 1
      %s66 = scalar_select %p63, %s64, %s65
      %p69 = pneg %p63
      %p70 = scmp.eq.s32.totalorder %s14, 1
      %p71 = por %p69, %p70
      %p72 = scmp.ne.s32.totalorder %s64, %s67
      %p73 = scmp.eq.s32.totalorder %s14, 0
      %p74 = por %p72, %p73
      %p75 = scmp.ne.s32.totalorder %s64, %s67
      %p76 = scmp.eq.s32.totalorder %s19, 1
      %p77 = por %p75, %p76
      %p78 = scmp.ne.s32.totalorder %s67, %s68
      %p79 = scmp.eq.s32.totalorder %s19, 0
      %p80 = por %p78, %p79
      %p81 = scmp.ne.s32.totalorder %s67, %s68
      %p82 = scmp.eq.s32.totalorder %s20, 1
      %p83 = por %p81, %p82
      %p85 = scmp.ne.s32.totalorder %s68, %s84
      %p86 = scmp.eq.s32.totalorder %s20, 0
      %p87 = por %p85, %p86
      %s88 = ssub.s32 %s21, %s33
      %s89 = ssub.s32 %s22, %s29
      %s90 = sor.u32 %s88, %s89
      %p91 = scmp.eq.s32.totalorder %s90, 0
      %s93 = sadd.s32 %s92, 1
      %s94 = scalar_select %p91, %s92, %s93
      %p97 = pneg %p91
      %p98 = scmp.eq.s32.totalorder %s14, 1
      %p99 = por %p97, %p98
      %p100 = scmp.ne.s32.totalorder %s92, %s95
      %p101 = scmp.eq.s32.totalorder %s14, 0
      %p102 = por %p100, %p101
      %p103 = scmp.ne.s32.totalorder %s92, %s95
      %p104 = scmp.eq.s32.totalorder %s19, 1
      %p105 = por %p103, %p104
      %p106 = scmp.ne.s32.totalorder %s95, %s96
      %p107 = scmp.eq.s32.totalorder %s19, 0
      %p108 = por %p106, %p107
      %p109 = scmp.ne.s32.totalorder %s95, %s96
      %p110 = scmp.eq.s32.totalorder %s20, 1
      %p111 = por %p109, %p110
      %p113 = scmp.ne.s32.totalorder %s96, %s112
      %p114 = scmp.eq.s32.totalorder %s20, 0
      %p115 = por %p113, %p114
      %p116 = scmp.le.s32.totalorder 1, %s14
      %p117 = scmp.lt.s32.totalorder %s14, 3
      %p118 = pnand %p116, %p117
      %p119 = pneg %p118
      // Predicated region
      $region9: #{_xsoftmax_lastdim.1} parent=5 // pred_check
        _
      $region10: #{_xsoftmax_lastdim.1} parent=5 // pred_check_branch
        %121 = sbr.rel (%p118) target = $region12
      $region11: #{_xsoftmax_lastdim.1} parent=5 // pred_region
        %s122 = ssub.s32 %s14, 1
      $region12: #{_xsoftmax_lastdim.1} parent=5 // pred_fallthru
        _
      %p123 = scmp.lt.s32.totalorder %s14, 2
      // Predicated region
      $region13: #{_xsoftmax_lastdim.1} parent=5 // pred_check
        %p124 = pneg %p123
      $region14: #{_xsoftmax_lastdim.1} parent=5 // pred_check_branch
        %126 = sbr.rel (%p124) target = $region16
      $region15: #{_xsoftmax_lastdim.1} parent=5 // pred_region
        // Predicated region
        $region17: #{_xsoftmax_lastdim.1} parent=15 // pred_check
          %p127 = pneg %p48
        $region18: #{_xsoftmax_lastdim.1} parent=15 // pred_check_branch
          %129 = sbr.rel (%p127) target = $region20
        $region19: #{_xsoftmax_lastdim.1} parent=15 // pred_region
          %s130 = sand.u32 %s38, 1
          %s131 = scalar_lea.sflag [#allocation3], %s130
          %s132 = sand.u32 %s38, 1
          %s133 = smul.addr %s132, 32
          %s134 = scalar_lea.vmem [#allocation2], %s133
          %s135 = smul.u32 4, %s22
          %s137 = ssub.s32 512, 512
          %138 = vsyncadd %s131, %s137
          %s139 = smul.addr %s21, 4
          %s140 = sadd.s32 %s135, %s139
          %s141 = smul.addr %s140, 128
          %s142 = scalar_lea.hbm %s0, %s141
          %s143 = sshll.u32 %s134, 4
          %s144 = int_to_ptr.vmem [resolvable:$true] %s143
          %149 = dma.hbm_to_vmem [thread:$0]  %s142, 512, %s144, %s131, 128, 128, 8
        $region20: #{_xsoftmax_lastdim.1} parent=15 // pred_fallthru
          _
        // Predicated region
        $region21: #{_xsoftmax_lastdim.1} parent=15 // pred_check
          %p150 = pneg %p74
        $region22: #{_xsoftmax_lastdim.1} parent=15 // pred_check_branch
          %152 = sbr.rel (%p150) target = $region24
        $region23: #{_xsoftmax_lastdim.1} parent=15 // pred_region
          %p153 = scmp.lt.s32.totalorder %s21, 1
          %s154 = scalar_select %p153, %s21, 1
          %s155 = scalar_lea.vmem %s1, %s154
        $region24: #{_xsoftmax_lastdim.1} parent=15 // pred_fallthru
          _
      $region16: #{_xsoftmax_lastdim.1} parent=5 // pred_fallthru
        _
      %p156 = scmp.le.s32.totalorder 1, %s14
      %p157 = scmp.lt.s32.totalorder %s14, 3
      %p158 = pnand %p156, %p157
      %p159 = pneg %p158
      // Predicated region
      $region25: #{_xsoftmax_lastdim.1} parent=5 // pred_check
        _
      $region26: #{_xsoftmax_lastdim.1} parent=5 // pred_check_branch
        %161 = sbr.rel (%p158) target = $region28
      $region27: #{_xsoftmax_lastdim.1} parent=5 // pred_region
        %s162 = ssub.s32 %s14, 1
        %s163 = sand.u32 %s41, 1
        %s164 = scalar_lea.sflag [#allocation3], %s163
        %s165 = sand.u32 %s41, 1
        %s166 = smul.addr %s165, 32
        %s167 = scalar_lea.vmem [#allocation2], %s166
        // Predicated region
        $region29: #{_xsoftmax_lastdim.1} parent=27 // pred_check
          %p168 = pneg %p54
        $region30: #{_xsoftmax_lastdim.1} parent=27 // pred_check_branch
          %170 = sbr.rel (%p168) target = $region32
        $region31: #{_xsoftmax_lastdim.1} parent=27 // pred_region
          %171 = dma.done %s164, 512
        $region32: #{_xsoftmax_lastdim.1} parent=27 // pred_fallthru
          _
        %s172 = sand.u32 %s41, 1
        %s173 = scalar_lea.sflag [#allocation3], %s172
        %s174 = sand.u32 %s41, 1
        %s175 = smul.addr %s174, 32
        %s176 = scalar_lea.vmem [#allocation2], %s175
        %p177 = pneg %p54
        %p178 = pneg %p51
        %p179 = scmp.lt.s32.totalorder %s23, 1
        %s180 = scalar_select %p179, %s23, 1
        %s181 = scalar_lea.vmem %s1, %s180
        %p182 = pneg %p80
        %p183 = pneg %p77
        %p184 = pneg %p108
        %p185 = pneg %p105
        %s186 = sand.u32 %s95, 1
        %s187 = scalar_lea.sflag [#allocation4], %s186
        %s188 = sand.u32 %s95, 1
        %s189 = smul.addr %s188, 32
        %s190 = scalar_lea.vmem [#allocation5], %s189
        %s191 = smul.u32 4, %s24
        %p192 = scmp.lt.s32.totalorder %s23, 1
        %s193 = scalar_select %p192, %s23, 1
        %s194 = scalar_lea.vmem %s1, %s193
        %s195 = smul.u32 4, %s24
        %v196 = vld [vmem:[%s167] sm:$0xff]
        %v197 = vld [vmem:[%s167 + $0x8] sm:$0xff]
        %v198 = vld [vmem:[%s167 + $0x10] sm:$0xff]
        %v199 = vld [vmem:[%s167 + $0x18] sm:$0xff]
        %v200 = vld [vmem:[%s194] sm:$0x1]
        %v202 = vlaneseq
        %v203 = vshrl.u32 %v202, 7
        %v204 = vsub.s32 0, %v203
        %v205 = vrot.slane %v200, %v204
        %v207 = vadd.f32 %v196, %v205
        %v208 = vadd.f32 %v197, %v205
        %v209 = vadd.f32 %v198, %v205
        %v210 = vadd.f32 %v199, %v205
        %211 = vmax.xlane.f32.xlu0 %v207
        %v212 = vpop.xlane.xlu0 %211
        %213 = vmax.xlane.f32.xlu0 %v208
        %v214 = vpop.xlane.xlu0 %213
        %215 = vmax.xlane.f32.xlu0 %v209
        %v216 = vpop.xlane.xlu0 %215
        %217 = vmax.xlane.f32.xlu0 %v210
        %v218 = vpop.xlane.xlu0 %217
        %v219 = vsub.f32 %v207, %v212
        %v220 = vsub.f32 %v208, %v214
        %v221 = vsub.f32 %v209, %v216
        %v222 = vsub.f32 %v210, %v218
        %v223 = vmul.f32 %v219, 1.442695
        %v224 = vpow.pop %v223
        %v225 = vmul.f32 %v220, 1.442695
        %v226 = vpow.pop %v225
        %v227 = vmul.f32 %v221, 1.442695
        %v228 = vpow.pop %v227
        %v229 = vmul.f32 %v222, 1.442695
        %v230 = vpow.pop %v229
        %231 = vadd.xlane.f32.xlu0 %v224
        %v232 = vpop.xlane.xlu0 %231
        %233 = vadd.xlane.f32.xlu0 %v226
        %v234 = vpop.xlane.xlu0 %233
        %235 = vadd.xlane.f32.xlu0 %v228
        %v236 = vpop.xlane.xlu0 %235
        %237 = vadd.xlane.f32.xlu0 %v230
        %v238 = vpop.xlane.xlu0 %237
        %v239 = vrcp.pop %v232
        %v240 = vrcp.pop %v234
        %v241 = vrcp.pop %v236
        %v242 = vrcp.pop %v238
        %v243 = vmul.f32 %v232, %v239
        %v244 = vmul.f32 %v234, %v240
        %v245 = vmul.f32 %v236, %v241
        %v246 = vmul.f32 %v238, %v242
        %v247 = vsub.f32 2.0, %v243
        %v248 = vsub.f32 2.0, %v244
        %v249 = vsub.f32 2.0, %v245
        %v250 = vsub.f32 2.0, %v246
        %v251 = vmul.f32 %v239, %v247
        %v252 = vmul.f32 %v240, %v248
        %v253 = vmul.f32 %v241, %v249
        %v254 = vmul.f32 %v242, %v250
        %v255 = vmul.f32 %v224, %v251
        %v256 = vmul.f32 %v226, %v252
        %v257 = vmul.f32 %v228, %v253
        %v258 = vmul.f32 %v230, %v254
        %259 = vst [vmem:[%s190] sm:$0xff] %v255
        %260 = vst [vmem:[%s190 + $0x8] sm:$0xff] %v256
        %261 = vst [vmem:[%s190 + $0x10] sm:$0xff] %v257
        %262 = vst [vmem:[%s190 + $0x18] sm:$0xff] %v258
        %s263 = sand.u32 %s95, 1
        %s264 = scalar_lea.sflag [#allocation4], %s263
        %s265 = sand.u32 %s95, 1
        %s266 = smul.addr %s265, 32
        %s267 = scalar_lea.vmem [#allocation5], %s266
        // Predicated region
        $region33: #{_xsoftmax_lastdim.1} parent=27 // pred_check
          %p268 = pneg %p105
        $region34: #{_xsoftmax_lastdim.1} parent=27 // pred_check_branch
          %270 = sbr.rel (%p268) target = $region36
        $region35: #{_xsoftmax_lastdim.1} parent=27 // pred_region
          %s271 = smul.u32 4, %s24
          %s273 = ssub.s32 512, 512
          %274 = vsyncadd %s264, %s273
          %s275 = smul.addr %s23, 4
          %s276 = sadd.s32 %s271, %s275
          %s277 = smul.addr %s276, 128
          %s278 = scalar_lea.hbm %s2, %s277
          %s279 = sshll.u32 %s267, 4
          %s280 = int_to_ptr.vmem [resolvable:$true] %s279
          %285 = dma.vmem_to_hbm [thread:$0]  %s280, 512, %s278, %s264, 128, 128, 8
        $region36: #{_xsoftmax_lastdim.1} parent=27 // pred_fallthru
          _
      $region28: #{_xsoftmax_lastdim.1} parent=5 // pred_fallthru
        _
      %p286 = scmp.le.s32.totalorder 2, %s14
      // Predicated region
      $region37: #{_xsoftmax_lastdim.1} parent=5 // pred_check
        %p287 = pneg %p286
      $region38: #{_xsoftmax_lastdim.1} parent=5 // pred_check_branch
        %289 = sbr.rel (%p287) target = $region40
      $region39: #{_xsoftmax_lastdim.1} parent=5 // pred_region
        %s290 = ssub.s32 %s14, 2
        // Predicated region
        $region41: #{_xsoftmax_lastdim.1} parent=39 // pred_check
          %p291 = pneg %p111
        $region42: #{_xsoftmax_lastdim.1} parent=39 // pred_check_branch
          %293 = sbr.rel (%p291) target = $region44
        $region43: #{_xsoftmax_lastdim.1} parent=39 // pred_region
          %s294 = sand.u32 %s96, 1
          %s295 = scalar_lea.sflag [#allocation4], %s294
          %s296 = sand.u32 %s96, 1
          %s297 = smul.addr %s296, 32
          %s298 = scalar_lea.vmem [#allocation5], %s297
          %299 = dma.done %s295, 512
        $region44: #{_xsoftmax_lastdim.1} parent=39 // pred_fallthru
          _
      $region40: #{_xsoftmax_lastdim.1} parent=5 // pred_fallthru
        _
    $region6: #{_xsoftmax_lastdim.1} parent=1 // loop_footer
      %s18 = sadd.s32 1, %s14
    $region7: #{_xsoftmax_lastdim.1} parent=1 // loop_footer_branch
      %13 = sbr.rel target = $region3
    $region8: #{_xsoftmax_lastdim.1} parent=1 // loop_exit
      _
    %300 = vsyncpa [#allocation3], 1
    %s301 = scalar_lea.sflag [#allocation3], 1
    %302 = vsyncpa %s301, 1
    %303 = vsyncpa [#allocation4], 1
    %s304 = scalar_lea.sflag [#allocation4], 1
    %305 = vsyncpa %s304, 1

</llo_original>
